<compile_context>
chip_gen: v6e
topology: v6e:2x2x1
jax: 0.10.0
libtpu: 0.0.40
codegen_flags: <defaults>
</compile_context>

<pallas_src>
import jax
import jax.numpy as jnp
from jax.experimental import pallas as pl
from jax.experimental.pallas import tpu as pltpu

LANE = 128  # TPU lane width; hidden dim is padded to this


def _round_up(n, m):
    return ((n + m - 1) // m) * m


def _cdiv(a, b):
    return -(-a // b)


def narx_mlp_kernel(x_ref, w1_ref, b1_ref, w2_ref, b2_ref, w3_ref, b3_ref, o_ref):
    # Layer 1: Linear(input_size, hidden_pad) + ReLU (MXU, f32 accumulate).
    h1 = jnp.dot(x_ref[...], w1_ref[...],
                 preferred_element_type=jnp.float32) + b1_ref[...]
    h1 = jnp.maximum(h1, 0.0)
    # Dropout(0.2) -> identity in eval mode.
    # Layer 2: Linear(hidden_pad, hidden_pad) + ReLU.
    h2 = jnp.dot(h1.astype(w2_ref.dtype), w2_ref[...],
                 preferred_element_type=jnp.float32) + b2_ref[...]
    h2 = jnp.maximum(h2, 0.0)
    # Layer 3: Linear(hidden_pad, 1) as f32 VPU multiply + XLU lane reduction
    # (avoids a degenerate N=1 MXU matmul and keeps elementwise work in f32).
    out = jnp.sum(h2 * w3_ref[...], axis=-1, keepdims=True) + b3_ref[...]  # (bt, 1)
    # Lane-dense store: fold the (bt, 1) column into a (bt//128, 128) slab so
    # the writeback uses dense vst instead of ~bt masked single-lane stores.
    bt = out.shape[0]
    o_ref[...] = out.reshape(bt // LANE, LANE).astype(o_ref.dtype)


def prepare_params(params, compute_dtype=jnp.bfloat16):
    """Zero-pad the hidden dim to LANE and cast the matmul weights once.

    Hoisted out of narx_forward so repeated forward calls don't re-pad/re-cast
    the weights (extra HBM passes).  w3/biases stay f32 (VPU path)."""
    w1, b1, w2, b2, w3, b3 = params
    h = w1.shape[1]
    hp = _round_up(h, LANE)
    ph = hp - h
    w1p = jnp.pad(w1, ((0, 0), (0, ph))).astype(compute_dtype)
    b1p = jnp.pad(b1.reshape(1, h), ((0, 0), (0, ph))).astype(jnp.float32)
    w2p = jnp.pad(w2, ((0, ph), (0, ph))).astype(compute_dtype)
    b2p = jnp.pad(b2.reshape(1, h), ((0, 0), (0, ph))).astype(jnp.float32)
    # w3: (h, 1) -> row vector (1, hp); padded rows multiply zeroed h2 columns.
    w3p = jnp.pad(w3.reshape(1, h), ((0, 0), (0, ph))).astype(jnp.float32)
    b3p = b3.reshape(1, 1).astype(jnp.float32)
    return w1p, b1p, w2p, b2p, w3p, b3p


def narx_forward(x, padded_params, *, b_tile=8192):
    """x: (B, input_size) float32 -> (B, 1) float32.

    padded_params: output of prepare_params.  Weights stay VMEM-resident via
    constant index_maps; the batch is pipelined on a parallel grid axis."""
    w1p, b1p, w2p, b2p, w3p, b3p = padded_params
    compute_dtype = w1p.dtype
    B, F = x.shape
    Hp = w1p.shape[1]

    # --- batch tiling ---------------------------------------------------
    # Lane-dense output needs bt % 128 == 0; with >1 grid steps the output
    # block (bt//128, 128) also needs its sublane dim % 8 == 0 -> bt % 1024.
    # bt is derived from cdiv(B, n_steps) to minimize dead-row padding.
    if B <= b_tile:
        if B >= 2 * 1024:
            n_steps = 2                               # keep both v7x TCs busy
            bt = _round_up(_cdiv(B, 2), 1024)
        else:
            n_steps = 1
            bt = _round_up(B, LANE)
    else:
        n_steps = _cdiv(B, b_tile)
        bt = _round_up(_cdiv(B, n_steps), 1024)
    Bp = bt * n_steps

    if Bp != B:
        x = jnp.pad(x, ((0, Bp - B), (0, 0)))
    x = x.astype(compute_dtype)

    # --- VMEM budget (lane-padded: the (bt, F) block occupies bt x 128) ---
    x_bytes = jnp.dtype(compute_dtype).itemsize
    n_xbuf = 3 if n_steps >= 3 else 2
    vmem_est = (n_xbuf * bt * LANE * x_bytes                 # x buffers
                + 2 * (bt // LANE) * LANE * 4                # out buffers
                + 2 * (F * Hp + Hp * Hp) * x_bytes           # w1, w2
                + 2 * (3 * Hp + 1) * 4)                      # biases + w3
    compiler_kwargs = dict(dimension_semantics=("parallel",))
    if vmem_est > 30 * 1024 * 1024:
        compiler_kwargs["vmem_limit_bytes"] = min(vmem_est + (4 << 20), 64 << 20)

    cost = pl.CostEstimate(
        flops=2 * Bp * (F * Hp + Hp * Hp + Hp),
        transcendentals=0,
        bytes_accessed=(x_bytes * Bp * F + 4 * Bp                    # x in, out
                        + x_bytes * (F * Hp + Hp * Hp)               # w1, w2
                        + 4 * (3 * Hp + 1)),                         # biases, w3
    )

    # x uses a 3-deep pipeline when there are enough steps to benefit (the
    # narrow (bt, 10) strided DMA hides poorly behind only 2 buffers).
    if n_steps >= 3:
        x_spec = pl.BlockSpec((bt, F), lambda i: (i, 0),
                              pipeline_mode=pl.Buffered(3))
    else:
        x_spec = pl.BlockSpec((bt, F), lambda i: (i, 0))

    const = lambda a: pl.BlockSpec(a.shape, lambda i: (0,) * a.ndim)

    out = pl.pallas_call(
        narx_mlp_kernel,
        out_shape=jax.ShapeDtypeStruct((Bp // LANE, LANE), jnp.float32),
        grid=(n_steps,),
        in_specs=[
            x_spec,                                    # x: pipelined per tile
            const(w1p), const(b1p),                    # weights VMEM-resident
            const(w2p), const(b2p),
            const(w3p), const(b3p),
        ],
        out_specs=pl.BlockSpec((bt // LANE, LANE), lambda i: (i, 0)),
        compiler_params=pltpu.CompilerParams(**compiler_kwargs),
        cost_estimate=cost,
    )(x, w1p, b1p, w2p, b2p, w3p, b3p)
    return out.reshape(Bp, 1)[:B]


def init_params(key, input_size, hidden_size):
    """Deterministic init mimicking nn.Linear's U(-1/sqrt(fan_in), 1/sqrt(fan_in)).
    Weights stored as (in, out) so the kernel does x @ W."""
    k1, k2, k3, k4, k5, k6 = jax.random.split(key, 6)

    def lin(kw, kb, fan_in, fan_out):
        bound = 1.0 / jnp.sqrt(fan_in)
        w = jax.random.uniform(kw, (fan_in, fan_out), jnp.float32, -bound, bound)
        b = jax.random.uniform(kb, (1, fan_out), jnp.float32, -bound, bound)
        return w, b

    w1, b1 = lin(k1, k2, input_size, hidden_size)
    w2, b2 = lin(k3, k4, hidden_size, hidden_size)
    w3, b3 = lin(k5, k6, hidden_size, 1)
    return (w1, b1, w2, b2, w3, b3)


def narx_reference(x, params):
    w1, b1, w2, b2, w3, b3 = params
    h1 = jnp.maximum(x @ w1 + b1, 0.0)
    h2 = jnp.maximum(h1 @ w2 + b2, 0.0)
    return h2 @ w3 + b3


if __name__ == "__main__":
    # input_size implied by NARXDataset: 3 lags + (weather cols + 2 time feats).
    # Synthetic weather width of 5 -> input_size = 3 + 5 + 2 = 10.
    batch = 8
    input_size = 10
    hidden_size = 64

    key = jax.random.PRNGKey(0)
    kx, kp, kx2 = jax.random.split(key, 3)
    x = jax.random.uniform(kx, (batch, input_size), jnp.float32)  # scaled feats in [0,1]
    params = init_params(kp, input_size, hidden_size)
    ref = narx_reference(x, params)

    # f32-compute path: tight check of the kernel machinery.
    out_f32 = narx_forward(x, prepare_params(params, jnp.float32))
    out_f32 = jax.block_until_ready(out_f32)
    assert out_f32.shape == (batch, 1)
    assert jnp.allclose(out_f32, ref, atol=1e-4, rtol=1e-4), "f32 mismatch vs reference"

    # Default bf16-matmul path (f32 accumulation): looser tolerance.
    out_bf16 = narx_forward(x, prepare_params(params))
    out_bf16 = jax.block_until_ready(out_bf16)
    assert out_bf16.shape == (batch, 1)
    assert jnp.allclose(out_bf16, ref, atol=3e-2, rtol=3e-2), "bf16 mismatch vs reference"

    # Multi-grid-step path: exercises tiling, batch padding, lane-dense out slab
    # and the 3-deep x pipeline.
    big_b = 2500
    xb = jax.random.uniform(kx2, (big_b, input_size), jnp.float32)
    refb = narx_reference(xb, params)
    outb = narx_forward(xb, prepare_params(params, jnp.float32), b_tile=1024)
    outb = jax.block_until_ready(outb)
    assert outb.shape == (big_b, 1)
    assert jnp.allclose(outb, refb, atol=1e-4, rtol=1e-4), "multi-step mismatch vs reference"

    print("KERNEL_OK")
</pallas_src>

<mosaic_0001>
module attributes {stable_mosaic.version = 11 : i64} {
  func.func @narx_mlp_kernel(%arg0: i32, %arg1: memref<128x10xf32, #tpu.memory_space<vmem>>, %arg2: memref<10x128xf32, #tpu.memory_space<vmem>>, %arg3: memref<1x128xf32, #tpu.memory_space<vmem>>, %arg4: memref<128x128xf32, #tpu.memory_space<vmem>>, %arg5: memref<1x128xf32, #tpu.memory_space<vmem>>, %arg6: memref<1x128xf32, #tpu.memory_space<vmem>>, %arg7: memref<1x1xf32, #tpu.memory_space<vmem>>, %arg8: memref<1x128xf32, #tpu.memory_space<vmem>>) attributes {dimension_semantics = [#tpu.dimension_semantics<parallel>], iteration_bounds = array<i64: 1>, scalar_prefetch = 0 : i64, scratch_operands = 0 : i64, tpu.core_type = #tpu.core_type<tc>, window_params = [{transform_indices = @transform_0, window_bounds = array<i64: 128, 10>}, {pipeline_mode = #tpu.pipeline_mode<synchronous>, transform_indices = @transform_1, window_bounds = array<i64: 10, 128>}, {pipeline_mode = #tpu.pipeline_mode<synchronous>, transform_indices = @transform_2, window_bounds = array<i64: 1, 128>}, {pipeline_mode = #tpu.pipeline_mode<synchronous>, transform_indices = @transform_3, window_bounds = array<i64: 128, 128>}, {pipeline_mode = #tpu.pipeline_mode<synchronous>, transform_indices = @transform_4, window_bounds = array<i64: 1, 128>}, {pipeline_mode = #tpu.pipeline_mode<synchronous>, transform_indices = @transform_5, window_bounds = array<i64: 1, 128>}, {pipeline_mode = #tpu.pipeline_mode<synchronous>, transform_indices = @transform_6, window_bounds = array<i64: 1, 1>}, {transform_indices = @transform_7, window_bounds = array<i64: 1, 128>}]} {
    %c0 = arith.constant 0 : index
    %c0_0 = arith.constant 0 : index
    %0 = vector.load %arg1[%c0, %c0_0] : memref<128x10xf32, #tpu.memory_space<vmem>>, vector<128x10xf32>
    %c0_1 = arith.constant 0 : index
    %c0_2 = arith.constant 0 : index
    %1 = vector.load %arg2[%c0_1, %c0_2] : memref<10x128xf32, #tpu.memory_space<vmem>>, vector<10x128xf32>
    %cst = arith.constant dense<0.000000e+00> : vector<128x128xf32>
    %2 = tpu.matmul %0, %1, %cst {dimension_numbers = #tpu.dot_dimension_numbers<[1], [0], [0], [1], [0, 0, 1, 1], [], []>} : vector<128x10xf32>, vector<10x128xf32>, vector<128x128xf32> -> vector<128x128xf32>
    %c0_3 = arith.constant 0 : index
    %c0_4 = arith.constant 0 : index
    %3 = vector.load %arg3[%c0_3, %c0_4] : memref<1x128xf32, #tpu.memory_space<vmem>>, vector<1x128xf32>
    %4 = vector.broadcast %3 : vector<1x128xf32> to vector<128x128xf32>
    %5 = arith.addf %2, %4 : vector<128x128xf32>
    %cst_5 = arith.constant 0.000000e+00 : f32
    %6 = vector.broadcast %cst_5 : f32 to vector<128x128xf32>
    %7 = arith.maximumf %5, %6 : vector<128x128xf32>
    %c0_6 = arith.constant 0 : index
    %c0_7 = arith.constant 0 : index
    %8 = vector.load %arg4[%c0_6, %c0_7] : memref<128x128xf32, #tpu.memory_space<vmem>>, vector<128x128xf32>
    %cst_8 = arith.constant dense<0.000000e+00> : vector<128x128xf32>
    %9 = tpu.matmul %7, %8, %cst_8 {dimension_numbers = #tpu.dot_dimension_numbers<[1], [0], [0], [1], [0, 0, 1, 1], [], []>} : vector<128x128xf32>, vector<128x128xf32>, vector<128x128xf32> -> vector<128x128xf32>
    %c0_9 = arith.constant 0 : index
    %c0_10 = arith.constant 0 : index
    %10 = vector.load %arg5[%c0_9, %c0_10] : memref<1x128xf32, #tpu.memory_space<vmem>>, vector<1x128xf32>
    %11 = vector.broadcast %10 : vector<1x128xf32> to vector<128x128xf32>
    %12 = arith.addf %9, %11 : vector<128x128xf32>
    %cst_11 = arith.constant 0.000000e+00 : f32
    %13 = vector.broadcast %cst_11 : f32 to vector<128x128xf32>
    %14 = arith.maximumf %12, %13 : vector<128x128xf32>
    %c0_12 = arith.constant 0 : index
    %c0_13 = arith.constant 0 : index
    %15 = vector.load %arg6[%c0_12, %c0_13] : memref<1x128xf32, #tpu.memory_space<vmem>>, vector<1x128xf32>
    %16 = vector.broadcast %15 : vector<1x128xf32> to vector<128x128xf32>
    %17 = arith.mulf %14, %16 : vector<128x128xf32>
    %cst_14 = arith.constant dense<0.000000e+00> : vector<128xf32>
    %18 = vector.multi_reduction <add>, %17, %cst_14 [1] : vector<128x128xf32> to vector<128xf32>
    %19 = vector.shape_cast %18 : vector<128xf32> to vector<128x1xf32>
    %c0_15 = arith.constant 0 : index
    %c0_16 = arith.constant 0 : index
    %20 = vector.load %arg7[%c0_15, %c0_16] : memref<1x1xf32, #tpu.memory_space<vmem>>, vector<1x1xf32>
    %21 = vector.broadcast %20 : vector<1x1xf32> to vector<128x1xf32>
    %22 = arith.addf %19, %21 : vector<128x1xf32>
    %23 = vector.shape_cast %22 : vector<128x1xf32> to vector<1x128xf32>
    %c0_17 = arith.constant 0 : index
    %c0_18 = arith.constant 0 : index
    %24 = vector.load %arg8[%c0_17, %c0_18] : memref<1x128xf32, #tpu.memory_space<vmem>>, vector<1x128xf32>
    tpu.vector_store %arg8[%c0_17, %c0_18], %23 {strides = array<i32>} : memref<1x128xf32, #tpu.memory_space<vmem>>, vector<1x128xf32>,
    return
  }
  func.func @transform_0(%arg0: i32) -> (i32, i32) {
    %c0_i32 = arith.constant 0 : i32
    %c0_i32_0 = arith.constant 0 : i32
    return %arg0, %c0_i32 : i32, i32
  }
  func.func @transform_1(%arg0: i32) -> (i32, i32) {
    %c0_i32 = arith.constant 0 : i32
    %c0_i32_0 = arith.constant 0 : i32
    %c0_i32_1 = arith.constant 0 : i32
    return %c0_i32, %c0_i32_0 : i32, i32
  }
  func.func @transform_2(%arg0: i32) -> (i32, i32) {
    %c0_i32 = arith.constant 0 : i32
    %c0_i32_0 = arith.constant 0 : i32
    %c0_i32_1 = arith.constant 0 : i32
    return %c0_i32, %c0_i32_0 : i32, i32
  }
  func.func @transform_3(%arg0: i32) -> (i32, i32) {
    %c0_i32 = arith.constant 0 : i32
    %c0_i32_0 = arith.constant 0 : i32
    %c0_i32_1 = arith.constant 0 : i32
    return %c0_i32, %c0_i32_0 : i32, i32
  }
  func.func @transform_4(%arg0: i32) -> (i32, i32) {
    %c0_i32 = arith.constant 0 : i32
    %c0_i32_0 = arith.constant 0 : i32
    %c0_i32_1 = arith.constant 0 : i32
    return %c0_i32, %c0_i32_0 : i32, i32
  }
  func.func @transform_5(%arg0: i32) -> (i32, i32) {
    %c0_i32 = arith.constant 0 : i32
    %c0_i32_0 = arith.constant 0 : i32
    %c0_i32_1 = arith.constant 0 : i32
    return %c0_i32, %c0_i32_0 : i32, i32
  }
  func.func @transform_6(%arg0: i32) -> (i32, i32) {
    %c0_i32 = arith.constant 0 : i32
    %c0_i32_0 = arith.constant 0 : i32
    %c0_i32_1 = arith.constant 0 : i32
    return %c0_i32, %c0_i32_0 : i32, i32
  }
  func.func @transform_7(%arg0: i32) -> (i32, i32) {
    %c0_i32 = arith.constant 0 : i32
    %c0_i32_0 = arith.constant 0 : i32
    return %arg0, %c0_i32 : i32, i32
  }
}

</mosaic_0001>

<llo_original>
// kernel: tpu_custom_call.1
$region0: #{tpu_custom_call.1}
  #allocation0 [shape = 'u32[]', space=smem, size = 0x4, offset = 0x4, fixed_abs, tag = 'smem constant byte address 0x4 - core index']
  #allocation1 [shape = 'u32[144,128]{1,0:T(1,128)}', space=vmem, size = 0x12000, scoped, tag = 'internal scratch']
  #allocation2 [shape = 'f32[1,1]{1,0:T(1,128)S(1)}', space=vmem, size = 0x200, scoped, tag = 'scoped memory for tpu_custom_call.1']
  %s0 = inlined_call_operand.vmem [shape: f32[128,10], index: 0, kind: input, shape index: {}]
  %s1 = inlined_call_operand.vmem [shape: f32[10,128], index: 1, kind: input, shape index: {}]
  %s2 = inlined_call_operand.vmem [shape: f32[1,128], index: 2, kind: input, shape index: {}]
  %s3 = inlined_call_operand.vmem [shape: f32[128,128], index: 3, kind: input, shape index: {}]
  %s4 = inlined_call_operand.vmem [shape: f32[1,128], index: 4, kind: input, shape index: {}]
  %s5 = inlined_call_operand.vmem [shape: f32[1,128], index: 5, kind: input, shape index: {}]
  %s6 = inlined_call_operand.<no memory space> [shape: f32[1,1], index: 6, kind: input, shape index: {}]
  %s7 = inlined_call_operand.hbm [shape: f32[1,128], index: 7, kind: output, shape index: {}]
  %s8 = sld [smem:[#allocation0]]
  $region38: #{tpu_custom_call.1} parent=0
    _
  %s10 = ssub.s32 1, %s8
  %s11 = scalar_select 0, %s10, %s8
  %v12 = vstv %s6
  %13 = vst [vmem:[#allocation2] sm:$0x1] %v12
  $region1: #{tpu_custom_call.1} parent=0
    #allocation3 [shape = 'u8[512]{0}', space=vmem, size = 0x400, scoped, tag = 'output window, operand 0, single buffered']
    #allocation4 [shape = 's32[1]{0}', space=sflag, size = 0x4, scoped, tag = 'scoped memory for tpu_custom_call.1']
    %14 = vsyncpa [#allocation4], 0
    // Predicated region
    $region2: #{tpu_custom_call.1} parent=1 // pred_check
      _
    $region3: #{tpu_custom_call.1} parent=1 // pred_check_branch
      %16 = sbr.rel (0) target = $region5
    $region4: #{tpu_custom_call.1} parent=1 // pred_region
      _
    $region5: #{tpu_custom_call.1} parent=1 // pred_fallthru
      _
    // Predicated region
    $region6: #{tpu_custom_call.1} parent=1 // pred_check
      _
    $region7: #{tpu_custom_call.1} parent=1 // pred_check_branch
      %18 = sbr.rel (0) target = $region9
    $region8: #{tpu_custom_call.1} parent=1 // pred_region
      _
    $region9: #{tpu_custom_call.1} parent=1 // pred_fallthru
      _
    // Predicated region
    $region10: #{tpu_custom_call.1} parent=1 // pred_check
      _
    $region11: #{tpu_custom_call.1} parent=1 // pred_check_branch
      %20 = sbr.rel (0) target = $region13
    $region12: #{tpu_custom_call.1} parent=1 // pred_region
      _
    $region13: #{tpu_custom_call.1} parent=1 // pred_fallthru
      _
    // Predicated region
    $region14: #{tpu_custom_call.1} parent=1 // pred_check
      _
    $region15: #{tpu_custom_call.1} parent=1 // pred_check_branch
      %22 = sbr.rel (0) target = $region17
    $region16: #{tpu_custom_call.1} parent=1 // pred_region
      _
    $region17: #{tpu_custom_call.1} parent=1 // pred_fallthru
      _
    // Predicated region
    $region18: #{tpu_custom_call.1} parent=1 // pred_check
      _
    $region19: #{tpu_custom_call.1} parent=1 // pred_check_branch
      %24 = sbr.rel (0) target = $region21
    $region20: #{tpu_custom_call.1} parent=1 // pred_region
      _
    $region21: #{tpu_custom_call.1} parent=1 // pred_fallthru
      _
    // Predicated region
    $region22: #{tpu_custom_call.1} parent=1 // pred_check
      _
    $region23: #{tpu_custom_call.1} parent=1 // pred_check_branch
      %26 = sbr.rel (0) target = $region25
    $region24: #{tpu_custom_call.1} parent=1 // pred_region
      _
    $region25: #{tpu_custom_call.1} parent=1 // pred_fallthru
      _
    // Predicated region
    $region26: #{tpu_custom_call.1} parent=1 // pred_check
      _
    $region27: #{tpu_custom_call.1} parent=1 // pred_check_branch
      %28 = sbr.rel (0) target = $region29
    $region28: #{tpu_custom_call.1} parent=1 // pred_region
      _
    $region29: #{tpu_custom_call.1} parent=1 // pred_fallthru
      _
    %v29 = vld [vmem:[%s0] sm:$0xff]
    %v30 = vld [vmem:[%s0 + $0x8] sm:$0xff]
    %v31 = vld [vmem:[%s0 + $0x10] sm:$0xff]
    %v32 = vld [vmem:[%s0 + $0x18] sm:$0xff]
    %v33 = vld [vmem:[%s0 + $0x20] sm:$0xff]
    %v34 = vld [vmem:[%s0 + $0x28] sm:$0xff]
    %v35 = vld [vmem:[%s0 + $0x30] sm:$0xff]
    %v36 = vld [vmem:[%s0 + $0x38] sm:$0xff]
    %v37 = vld [vmem:[%s0 + $0x40] sm:$0xff]
    %v38 = vld [vmem:[%s0 + $0x48] sm:$0xff]
    %v39 = vld [vmem:[%s0 + $0x50] sm:$0xff]
    %v40 = vld [vmem:[%s0 + $0x58] sm:$0xff]
    %v41 = vld [vmem:[%s0 + $0x60] sm:$0xff]
    %v42 = vld [vmem:[%s0 + $0x68] sm:$0xff]
    %v43 = vld [vmem:[%s0 + $0x70] sm:$0xff]
    %v44 = vld [vmem:[%s0 + $0x78] sm:$0xff]
    %v45 = vld [vmem:[%s1] sm:$0xff]
    %v46 = vld [vmem:[%s1 + $0x8] sm:$0x3]
    %v47 = vld [vmem:[%s2] sm:$0x1]
    %v49 = vlaneseq
    %v50 = vshrl.u32 %v49, 7
    %v51 = vsub.s32 0, %v50
    %v52 = vrot.slane %v47, %v51
    %vm54 = vcmask 80896
    %v56 = vsel %vm54, %v29, 0
    %v59 = vsel %vm54, %v30, 0
    %v62 = vsel %vm54, %v31, 0
    %v65 = vsel %vm54, %v32, 0
    %v68 = vsel %vm54, %v33, 0
    %v71 = vsel %vm54, %v34, 0
    %v74 = vsel %vm54, %v35, 0
    %v77 = vsel %vm54, %v36, 0
    %v80 = vsel %vm54, %v37, 0
    %v83 = vsel %vm54, %v38, 0
    %v86 = vsel %vm54, %v39, 0
    %v89 = vsel %vm54, %v40, 0
    %v92 = vsel %vm54, %v41, 0
    %v95 = vsel %vm54, %v42, 0
    %v98 = vsel %vm54, %v43, 0
    %v101 = vsel %vm54, %v44, 0
    %vm103 = vcmask 1041408
    %v105 = vsel %vm103, %v46, 0
    %107 = vmatprep.subr.mxu0 0.0
    %108 = vmatpush1.msra.mxu0 0.0
    %109 = vmatprep.subr.mxu0 0.0
    %110 = vmatpush1.msra.mxu0 0.0
    %111 = vmatprep.subr.mxu0 0.0
    %112 = vmatpush1.msra.mxu0 0.0
    %113 = vmatprep.subr.mxu0 0.0
    %114 = vmatpush1.msra.mxu0 0.0
    %115 = vmatprep.subr.mxu0 0.0
    %116 = vmatpush1.msra.mxu0 0.0
    %117 = vmatprep.subr.mxu0 0.0
    %118 = vmatpush1.msra.mxu0 0.0
    %119 = vmatprep.subr.mxu0 0.0
    %120 = vmatpush1.msra.mxu0 0.0
    %121 = vmatprep.subr.mxu0 0.0
    %122 = vmatpush1.msra.mxu0 0.0
    %123 = vmatprep.subr.mxu0 0.0
    %124 = vmatpush1.msra.mxu0 0.0
    %125 = vmatprep.subr.mxu0 0.0
    %126 = vmatpush1.msra.mxu0 0.0
    %127 = vmatprep.subr.mxu0 0.0
    %128 = vmatpush1.msra.mxu0 0.0
    %129 = vmatprep.subr.mxu0 0.0
    %130 = vmatpush1.msra.mxu0 0.0
    %131 = vmatprep.subr.mxu0 0.0
    %132 = vmatpush1.msra.mxu0 0.0
    %133 = vmatprep.subr.mxu0 0.0
    %134 = vmatpush1.msra.mxu0 0.0
    %135 = vmatprep.subr.mxu0 0.0
    %136 = vmatpush1.msra.mxu0 %v105
    %137 = vmatprep.subr.mxu0 0.0
    %138 = vmatpush1.msra.mxu0 %v45
    %139 = vmatprep.subr.mxu0 0.0
    %140 = vmatpush2.msra.mxu0 0.0
    %141 = vmatprep.subr.mxu0 0.0
    %142 = vmatpush2.msra.mxu0 0.0
    %143 = vmatprep.subr.mxu0 0.0
    %144 = vmatpush2.msra.mxu0 0.0
    %145 = vmatprep.subr.mxu0 0.0
    %146 = vmatpush2.msra.mxu0 0.0
    %147 = vmatprep.subr.mxu0 0.0
    %148 = vmatpush2.msra.mxu0 0.0
    %149 = vmatprep.subr.mxu0 0.0
    %150 = vmatpush2.msra.mxu0 0.0
    %151 = vmatprep.subr.mxu0 0.0
    %152 = vmatpush2.msra.mxu0 0.0
    %153 = vmatprep.subr.mxu0 0.0
    %154 = vmatpush2.msra.mxu0 0.0
    %155 = vmatprep.subr.mxu0 0.0
    %156 = vmatpush2.msra.mxu0 0.0
    %157 = vmatprep.subr.mxu0 0.0
    %158 = vmatpush2.msra.mxu0 0.0
    %159 = vmatprep.subr.mxu0 0.0
    %160 = vmatpush2.msra.mxu0 0.0
    %161 = vmatprep.subr.mxu0 0.0
    %162 = vmatpush2.msra.mxu0 0.0
    %163 = vmatprep.subr.mxu0 0.0
    %164 = vmatpush2.msra.mxu0 0.0
    %165 = vmatprep.subr.mxu0 0.0
    %166 = vmatpush2.msra.mxu0 0.0
    %167 = vmatprep.subr.mxu0 0.0
    %168 = vmatpush2.msra.mxu0 0.0
    %169 = vmatprep.subr.mxu0 0.0
    %170 = vmatpush2.msra.mxu0 0.0
    %171 = vmatprep.mubr.f32.mxu0 0.0
    %172 = vmatmul.mubr.f32.gmra.mxu0 %v56
    %v173 = vpop.f32.mrf.mxu0
    %v174 = vadd.f32 %v52, %v173
    %v175 = vpop.f32.mrf.mxu0
    %176 = vmatprep.mubr.f32.mxu0 0.0
    %177 = vmatmul.mubr.f32.gmra.mxu0 %v59
    %v178 = vpop.f32.mrf.mxu0
    %v179 = vadd.f32 %v52, %v178
    %v180 = vpop.f32.mrf.mxu0
    %181 = vmatprep.mubr.f32.mxu0 0.0
    %182 = vmatmul.mubr.f32.gmra.mxu0 %v62
    %v183 = vpop.f32.mrf.mxu0
    %v184 = vadd.f32 %v52, %v183
    %v185 = vpop.f32.mrf.mxu0
    %186 = vmatprep.mubr.f32.mxu0 0.0
    %187 = vmatmul.mubr.f32.gmra.mxu0 %v65
    %v188 = vpop.f32.mrf.mxu0
    %v189 = vadd.f32 %v52, %v188
    %v190 = vpop.f32.mrf.mxu0
    %191 = vmatprep.mubr.f32.mxu0 0.0
    %192 = vmatmul.mubr.f32.gmra.mxu0 %v68
    %v193 = vpop.f32.mrf.mxu0
    %v194 = vadd.f32 %v52, %v193
    %v195 = vpop.f32.mrf.mxu0
    %196 = vmatprep.mubr.f32.mxu0 0.0
    %197 = vmatmul.mubr.f32.gmra.mxu0 %v71
    %v198 = vpop.f32.mrf.mxu0
    %v199 = vadd.f32 %v52, %v198
    %v200 = vpop.f32.mrf.mxu0
    %201 = vmatprep.mubr.f32.mxu0 0.0
    %202 = vmatmul.mubr.f32.gmra.mxu0 %v74
    %v203 = vpop.f32.mrf.mxu0
    %v204 = vadd.f32 %v52, %v203
    %v205 = vpop.f32.mrf.mxu0
    %206 = vmatprep.mubr.f32.mxu0 0.0
    %207 = vmatmul.mubr.f32.gmra.mxu0 %v77
    %v208 = vpop.f32.mrf.mxu0
    %v209 = vadd.f32 %v52, %v208
    %v210 = vpop.f32.mrf.mxu0
    %211 = vmatprep.mubr.f32.mxu0 0.0
    %212 = vmatmul.mubr.f32.gmra.mxu0 %v80
    %v213 = vpop.f32.mrf.mxu0
    %v214 = vadd.f32 %v52, %v213
    %v215 = vpop.f32.mrf.mxu0
    %216 = vmatprep.mubr.f32.mxu0 0.0
    %217 = vmatmul.mubr.f32.gmra.mxu0 %v83
    %v218 = vpop.f32.mrf.mxu0
    %v219 = vadd.f32 %v52, %v218
    %v220 = vpop.f32.mrf.mxu0
    %221 = vmatprep.mubr.f32.mxu0 0.0
    %222 = vmatmul.mubr.f32.gmra.mxu0 %v86
    %v223 = vpop.f32.mrf.mxu0
    %v224 = vadd.f32 %v52, %v223
    %v225 = vpop.f32.mrf.mxu0
    %226 = vmatprep.mubr.f32.mxu0 0.0
    %227 = vmatmul.mubr.f32.gmra.mxu0 %v89
    %v228 = vpop.f32.mrf.mxu0
    %v229 = vadd.f32 %v52, %v228
    %v230 = vpop.f32.mrf.mxu0
    %231 = vmatprep.mubr.f32.mxu0 0.0
    %232 = vmatmul.mubr.f32.gmra.mxu0 %v92
    %v233 = vpop.f32.mrf.mxu0
    %v234 = vadd.f32 %v52, %v233
    %v235 = vpop.f32.mrf.mxu0
    %236 = vmatprep.mubr.f32.mxu0 0.0
    %237 = vmatmul.mubr.f32.gmra.mxu0 %v95
    %v238 = vpop.f32.mrf.mxu0
    %v239 = vadd.f32 %v52, %v238
    %v240 = vpop.f32.mrf.mxu0
    %241 = vmatprep.mubr.f32.mxu0 0.0
    %242 = vmatmul.mubr.f32.gmra.mxu0 %v98
    %v243 = vpop.f32.mrf.mxu0
    %v244 = vadd.f32 %v52, %v243
    %v245 = vpop.f32.mrf.mxu0
    %246 = vmatprep.mubr.f32.mxu0 0.0
    %247 = vmatmul.mubr.f32.gmra.mxu0 %v101
    %v248 = vpop.f32.mrf.mxu0
    %v249 = vadd.f32 %v52, %v248
    %v250 = vpop.f32.mrf.mxu0
    %251 = vdwg.mxu0
    %v252 = vmax.f32 %v174, 0.0
    %v253 = vmax.f32 %v179, 0.0
    %v254 = vmax.f32 %v184, 0.0
    %v255 = vmax.f32 %v189, 0.0
    %v256 = vmax.f32 %v194, 0.0
    %v257 = vmax.f32 %v199, 0.0
    %v258 = vmax.f32 %v204, 0.0
    %v259 = vmax.f32 %v209, 0.0
    %v260 = vmax.f32 %v214, 0.0
    %v261 = vmax.f32 %v219, 0.0
    %v262 = vmax.f32 %v224, 0.0
    %v263 = vmax.f32 %v229, 0.0
    %v264 = vmax.f32 %v234, 0.0
    %v265 = vmax.f32 %v239, 0.0
    %v266 = vmax.f32 %v244, 0.0
    %v267 = vmax.f32 %v249, 0.0
    %v268 = vld [vmem:[%s3] sm:$0xff]
    %v269 = vld [vmem:[%s3 + $0x8] sm:$0xff]
    %v270 = vld [vmem:[%s3 + $0x10] sm:$0xff]
    %v271 = vld [vmem:[%s3 + $0x18] sm:$0xff]
    %v272 = vld [vmem:[%s3 + $0x20] sm:$0xff]
    %v273 = vld [vmem:[%s3 + $0x28] sm:$0xff]
    %v274 = vld [vmem:[%s3 + $0x30] sm:$0xff]
    %v275 = vld [vmem:[%s3 + $0x38] sm:$0xff]
    %v276 = vld [vmem:[%s3 + $0x40] sm:$0xff]
    %v277 = vld [vmem:[%s3 + $0x48] sm:$0xff]
    %v278 = vld [vmem:[%s3 + $0x50] sm:$0xff]
    %v279 = vld [vmem:[%s3 + $0x58] sm:$0xff]
    %v280 = vld [vmem:[%s3 + $0x60] sm:$0xff]
    %v281 = vld [vmem:[%s3 + $0x68] sm:$0xff]
    %v282 = vld [vmem:[%s3 + $0x70] sm:$0xff]
    %v283 = vld [vmem:[%s3 + $0x78] sm:$0xff]
    %v284 = vld [vmem:[%s4] sm:$0x1]
    %v286 = vlaneseq
    %v287 = vshrl.u32 %v286, 7
    %v288 = vsub.s32 0, %v287
    %v289 = vrot.slane %v284, %v288
    %291 = vmatprep.subr.mxu0 0.0
    %292 = vmatpush1.msra.mxu0 %v283
    %293 = vmatprep.subr.mxu0 0.0
    %294 = vmatpush1.msra.mxu0 %v282
    %295 = vmatprep.subr.mxu0 0.0
    %296 = vmatpush1.msra.mxu0 %v281
    %297 = vmatprep.subr.mxu0 0.0
    %298 = vmatpush1.msra.mxu0 %v280
    %299 = vmatprep.subr.mxu0 0.0
    %300 = vmatpush1.msra.mxu0 %v279
    %301 = vmatprep.subr.mxu0 0.0
    %302 = vmatpush1.msra.mxu0 %v278
    %303 = vmatprep.subr.mxu0 0.0
    %304 = vmatpush1.msra.mxu0 %v277
    %305 = vmatprep.subr.mxu0 0.0
    %306 = vmatpush1.msra.mxu0 %v276
    %307 = vmatprep.subr.mxu0 0.0
    %308 = vmatpush1.msra.mxu0 %v275
    %309 = vmatprep.subr.mxu0 0.0
    %310 = vmatpush1.msra.mxu0 %v274
    %311 = vmatprep.subr.mxu0 0.0
    %312 = vmatpush1.msra.mxu0 %v273
    %313 = vmatprep.subr.mxu0 0.0
    %314 = vmatpush1.msra.mxu0 %v272
    %315 = vmatprep.subr.mxu0 0.0
    %316 = vmatpush1.msra.mxu0 %v271
    %317 = vmatprep.subr.mxu0 0.0
    %318 = vmatpush1.msra.mxu0 %v270
    %319 = vmatprep.subr.mxu0 0.0
    %320 = vmatpush1.msra.mxu0 %v269
    %321 = vmatprep.subr.mxu0 0.0
    %322 = vmatpush1.msra.mxu0 %v268
    %323 = vmatprep.subr.mxu0 0.0
    %324 = vmatpush2.msra.mxu0 0.0
    %325 = vmatprep.subr.mxu0 0.0
    %326 = vmatpush2.msra.mxu0 0.0
    %327 = vmatprep.subr.mxu0 0.0
    %328 = vmatpush2.msra.mxu0 0.0
    %329 = vmatprep.subr.mxu0 0.0
    %330 = vmatpush2.msra.mxu0 0.0
    %331 = vmatprep.subr.mxu0 0.0
    %332 = vmatpush2.msra.mxu0 0.0
    %333 = vmatprep.subr.mxu0 0.0
    %334 = vmatpush2.msra.mxu0 0.0
    %335 = vmatprep.subr.mxu0 0.0
    %336 = vmatpush2.msra.mxu0 0.0
    %337 = vmatprep.subr.mxu0 0.0
    %338 = vmatpush2.msra.mxu0 0.0
    %339 = vmatprep.subr.mxu0 0.0
    %340 = vmatpush2.msra.mxu0 0.0
    %341 = vmatprep.subr.mxu0 0.0
    %342 = vmatpush2.msra.mxu0 0.0
    %343 = vmatprep.subr.mxu0 0.0
    %344 = vmatpush2.msra.mxu0 0.0
    %345 = vmatprep.subr.mxu0 0.0
    %346 = vmatpush2.msra.mxu0 0.0
    %347 = vmatprep.subr.mxu0 0.0
    %348 = vmatpush2.msra.mxu0 0.0
    %349 = vmatprep.subr.mxu0 0.0
    %350 = vmatpush2.msra.mxu0 0.0
    %351 = vmatprep.subr.mxu0 0.0
    %352 = vmatpush2.msra.mxu0 0.0
    %353 = vmatprep.subr.mxu0 0.0
    %354 = vmatpush2.msra.mxu0 0.0
    %355 = vmatprep.mubr.f32.mxu0 0.0
    %356 = vmatmul.mubr.f32.gmra.mxu0 %v252
    %v357 = vpop.f32.mrf.mxu0
    %v358 = vadd.f32 %v289, %v357
    %v359 = vpop.f32.mrf.mxu0
    %360 = vmatprep.mubr.f32.mxu0 0.0
    %361 = vmatmul.mubr.f32.gmra.mxu0 %v253
    %v362 = vpop.f32.mrf.mxu0
    %v363 = vadd.f32 %v289, %v362
    %v364 = vpop.f32.mrf.mxu0
    %365 = vmatprep.mubr.f32.mxu0 0.0
    %366 = vmatmul.mubr.f32.gmra.mxu0 %v254
    %v367 = vpop.f32.mrf.mxu0
    %v368 = vadd.f32 %v289, %v367
    %v369 = vpop.f32.mrf.mxu0
    %370 = vmatprep.mubr.f32.mxu0 0.0
    %371 = vmatmul.mubr.f32.gmra.mxu0 %v255
    %v372 = vpop.f32.mrf.mxu0
    %v373 = vadd.f32 %v289, %v372
    %v374 = vpop.f32.mrf.mxu0
    %375 = vmatprep.mubr.f32.mxu0 0.0
    %376 = vmatmul.mubr.f32.gmra.mxu0 %v256
    %v377 = vpop.f32.mrf.mxu0
    %v378 = vadd.f32 %v289, %v377
    %v379 = vpop.f32.mrf.mxu0
    %380 = vmatprep.mubr.f32.mxu0 0.0
    %381 = vmatmul.mubr.f32.gmra.mxu0 %v257
    %v382 = vpop.f32.mrf.mxu0
    %v383 = vadd.f32 %v289, %v382
    %v384 = vpop.f32.mrf.mxu0
    %385 = vmatprep.mubr.f32.mxu0 0.0
    %386 = vmatmul.mubr.f32.gmra.mxu0 %v258
    %v387 = vpop.f32.mrf.mxu0
    %v388 = vadd.f32 %v289, %v387
    %v389 = vpop.f32.mrf.mxu0
    %390 = vmatprep.mubr.f32.mxu0 0.0
    %391 = vmatmul.mubr.f32.gmra.mxu0 %v259
    %v392 = vpop.f32.mrf.mxu0
    %v393 = vadd.f32 %v289, %v392
    %v394 = vpop.f32.mrf.mxu0
    %395 = vmatprep.mubr.f32.mxu0 0.0
    %396 = vmatmul.mubr.f32.gmra.mxu0 %v260
    %v397 = vpop.f32.mrf.mxu0
    %v398 = vadd.f32 %v289, %v397
    %v399 = vpop.f32.mrf.mxu0
    %400 = vmatprep.mubr.f32.mxu0 0.0
    %401 = vmatmul.mubr.f32.gmra.mxu0 %v261
    %v402 = vpop.f32.mrf.mxu0
    %v403 = vadd.f32 %v289, %v402
    %v404 = vpop.f32.mrf.mxu0
    %405 = vmatprep.mubr.f32.mxu0 0.0
    %406 = vmatmul.mubr.f32.gmra.mxu0 %v262
    %v407 = vpop.f32.mrf.mxu0
    %v408 = vadd.f32 %v289, %v407
    %v409 = vpop.f32.mrf.mxu0
    %410 = vmatprep.mubr.f32.mxu0 0.0
    %411 = vmatmul.mubr.f32.gmra.mxu0 %v263
    %v412 = vpop.f32.mrf.mxu0
    %v413 = vadd.f32 %v289, %v412
    %v414 = vpop.f32.mrf.mxu0
    %415 = vmatprep.mubr.f32.mxu0 0.0
    %416 = vmatmul.mubr.f32.gmra.mxu0 %v264
    %v417 = vpop.f32.mrf.mxu0
    %v418 = vadd.f32 %v289, %v417
    %v419 = vpop.f32.mrf.mxu0
    %420 = vmatprep.mubr.f32.mxu0 0.0
    %421 = vmatmul.mubr.f32.gmra.mxu0 %v265
    %v422 = vpop.f32.mrf.mxu0
    %v423 = vadd.f32 %v289, %v422
    %v424 = vpop.f32.mrf.mxu0
    %425 = vmatprep.mubr.f32.mxu0 0.0
    %426 = vmatmul.mubr.f32.gmra.mxu0 %v266
    %v427 = vpop.f32.mrf.mxu0
    %v428 = vadd.f32 %v289, %v427
    %v429 = vpop.f32.mrf.mxu0
    %430 = vmatprep.mubr.f32.mxu0 0.0
    %431 = vmatmul.mubr.f32.gmra.mxu0 %v267
    %v432 = vpop.f32.mrf.mxu0
    %v433 = vadd.f32 %v289, %v432
    %v434 = vpop.f32.mrf.mxu0
    %435 = vdwg.mxu0
    %v436 = vmax.f32 %v358, 0.0
    %v437 = vmax.f32 %v363, 0.0
    %v438 = vmax.f32 %v368, 0.0
    %v439 = vmax.f32 %v373, 0.0
    %v440 = vmax.f32 %v378, 0.0
    %v441 = vmax.f32 %v383, 0.0
    %v442 = vmax.f32 %v388, 0.0
    %v443 = vmax.f32 %v393, 0.0
    %v444 = vmax.f32 %v398, 0.0
    %v445 = vmax.f32 %v403, 0.0
    %v446 = vmax.f32 %v408, 0.0
    %v447 = vmax.f32 %v413, 0.0
    %v448 = vmax.f32 %v418, 0.0
    %v449 = vmax.f32 %v423, 0.0
    %v450 = vmax.f32 %v428, 0.0
    %v451 = vmax.f32 %v433, 0.0
    %v452 = vld [vmem:[%s5] sm:$0x1]
    %v454 = vlaneseq
    %v455 = vshrl.u32 %v454, 7
    %v456 = vsub.s32 0, %v455
    %v457 = vrot.slane %v452, %v456
    %v459 = vmul.f32 %v436, %v457
    %v460 = vmul.f32 %v437, %v457
    %v461 = vmul.f32 %v438, %v457
    %v462 = vmul.f32 %v439, %v457
    %v463 = vmul.f32 %v440, %v457
    %v464 = vmul.f32 %v441, %v457
    %v465 = vmul.f32 %v442, %v457
    %v466 = vmul.f32 %v443, %v457
    %v467 = vmul.f32 %v444, %v457
    %v468 = vmul.f32 %v445, %v457
    %v469 = vmul.f32 %v446, %v457
    %v470 = vmul.f32 %v447, %v457
    %v471 = vmul.f32 %v448, %v457
    %v472 = vmul.f32 %v449, %v457
    %v473 = vmul.f32 %v450, %v457
    %v474 = vmul.f32 %v451, %v457
    %475 = vadd.xlane.f32.xlu0 %v459
    %v476 = vpop.xlane.xlu0 %475
    %477 = vadd.xlane.f32.xlu0 %v460
    %v478 = vpop.xlane.xlu0 %477
    %479 = vadd.xlane.f32.xlu0 %v461
    %v480 = vpop.xlane.xlu0 %479
    %481 = vadd.xlane.f32.xlu0 %v462
    %v482 = vpop.xlane.xlu0 %481
    %483 = vadd.xlane.f32.xlu0 %v463
    %v484 = vpop.xlane.xlu0 %483
    %485 = vadd.xlane.f32.xlu0 %v464
    %v486 = vpop.xlane.xlu0 %485
    %487 = vadd.xlane.f32.xlu0 %v465
    %v488 = vpop.xlane.xlu0 %487
    %489 = vadd.xlane.f32.xlu0 %v466
    %v490 = vpop.xlane.xlu0 %489
    %491 = vadd.xlane.f32.xlu0 %v467
    %v492 = vpop.xlane.xlu0 %491
    %493 = vadd.xlane.f32.xlu0 %v468
    %v494 = vpop.xlane.xlu0 %493
    %495 = vadd.xlane.f32.xlu0 %v469
    %v496 = vpop.xlane.xlu0 %495
    %497 = vadd.xlane.f32.xlu0 %v470
    %v498 = vpop.xlane.xlu0 %497
    %499 = vadd.xlane.f32.xlu0 %v471
    %v500 = vpop.xlane.xlu0 %499
    %501 = vadd.xlane.f32.xlu0 %v472
    %v502 = vpop.xlane.xlu0 %501
    %503 = vadd.xlane.f32.xlu0 %v473
    %v504 = vpop.xlane.xlu0 %503
    %505 = vadd.xlane.f32.xlu0 %v474
    %v506 = vpop.xlane.xlu0 %505
    %v507 = vld [vmem:[#allocation2] sm:$0x1]
    %v509 = vlaneseq
    %v510 = vshrl.u32 %v509, 7
    %v511 = vsub.s32 0, %v510
    %v512 = vrot.slane %v507, %v511
    %v514 = vadd.f32 %v476, %v512
    %v515 = vadd.f32 %v478, %v512
    %v516 = vadd.f32 %v480, %v512
    %v517 = vadd.f32 %v482, %v512
    %v518 = vadd.f32 %v484, %v512
    %v519 = vadd.f32 %v486, %v512
    %v520 = vadd.f32 %v488, %v512
    %v521 = vadd.f32 %v490, %v512
    %v522 = vadd.f32 %v492, %v512
    %v523 = vadd.f32 %v494, %v512
    %v524 = vadd.f32 %v496, %v512
    %v525 = vadd.f32 %v498, %v512
    %v526 = vadd.f32 %v500, %v512
    %v527 = vadd.f32 %v502, %v512
    %v528 = vadd.f32 %v504, %v512
    %v529 = vadd.f32 %v506, %v512
    %546 = vset.pattern.permute.xlu0 0
    %547 = vperm.xlu0 %546, %v514
    %v548 = vpop.permute.xlu0 %547
    %549 = vset.pattern.permute.xlu0 0
    %550 = vperm.xlu0 %549, %v515
    %v551 = vpop.permute.xlu0 %550
    %552 = vset.pattern.permute.xlu0 0
    %553 = vperm.xlu0 %552, %v516
    %v554 = vpop.permute.xlu0 %553
    %555 = vset.pattern.permute.xlu0 0
    %556 = vperm.xlu0 %555, %v517
    %v557 = vpop.permute.xlu0 %556
    %558 = vset.pattern.permute.xlu0 0
    %559 = vperm.xlu0 %558, %v518
    %v560 = vpop.permute.xlu0 %559
    %561 = vset.pattern.permute.xlu0 0
    %562 = vperm.xlu0 %561, %v519
    %v563 = vpop.permute.xlu0 %562
    %564 = vset.pattern.permute.xlu0 0
    %565 = vperm.xlu0 %564, %v520
    %v566 = vpop.permute.xlu0 %565
    %567 = vset.pattern.permute.xlu0 0
    %568 = vperm.xlu0 %567, %v521
    %v569 = vpop.permute.xlu0 %568
    %570 = vset.pattern.permute.xlu0 0
    %571 = vperm.xlu0 %570, %v522
    %v572 = vpop.permute.xlu0 %571
    %573 = vset.pattern.permute.xlu0 0
    %574 = vperm.xlu0 %573, %v523
    %v575 = vpop.permute.xlu0 %574
    %576 = vset.pattern.permute.xlu0 0
    %577 = vperm.xlu0 %576, %v524
    %v578 = vpop.permute.xlu0 %577
    %579 = vset.pattern.permute.xlu0 0
    %580 = vperm.xlu0 %579, %v525
    %v581 = vpop.permute.xlu0 %580
    %582 = vset.pattern.permute.xlu0 0
    %583 = vperm.xlu0 %582, %v526
    %v584 = vpop.permute.xlu0 %583
    %585 = vset.pattern.permute.xlu0 0
    %586 = vperm.xlu0 %585, %v527
    %v587 = vpop.permute.xlu0 %586
    %588 = vset.pattern.permute.xlu0 0
    %589 = vperm.xlu0 %588, %v528
    %v590 = vpop.permute.xlu0 %589
    %591 = vset.pattern.permute.xlu0 0
    %592 = vperm.xlu0 %591, %v529
    %v593 = vpop.permute.xlu0 %592
    %v594 = vlaneseq
    %v595 = vand.u32 %v594, 127
    %v596 = vlaneseq
    %v597 = vshrl.u32 %v596, 7
    %v598 = vsub.s32 %v595, %v597
    %v599 = vrot.slane %v548, %v598
    %v600 = vadd.s32 %v595, 4294967288
    %v601 = vlaneseq
    %v602 = vshrl.u32 %v601, 7
    %v603 = vsub.s32 %v600, %v602
    %v604 = vrot.slane %v551, %v603
    %vm605 = vcmask 130112
    %v606 = vsel %vm605, %v604, %v599
    %v607 = vadd.s32 %v595, 4294967280
    %v608 = vlaneseq
    %v609 = vshrl.u32 %v608, 7
    %v610 = vsub.s32 %v607, %v609
    %v611 = vrot.slane %v554, %v610
    %vm612 = vcmask 195712
    %v613 = vsel %vm612, %v611, %v606
    %v614 = vadd.s32 %v595, 4294967272
    %v615 = vlaneseq
    %v616 = vshrl.u32 %v615, 7
    %v617 = vsub.s32 %v614, %v616
    %v618 = vrot.slane %v557, %v617
    %vm619 = vcmask 261312
    %v620 = vsel %vm619, %v618, %v613
    %v621 = vadd.s32 %v595, 4294967264
    %v622 = vlaneseq
    %v623 = vshrl.u32 %v622, 7
    %v624 = vsub.s32 %v621, %v623
    %v625 = vrot.slane %v560, %v624
    %vm626 = vcmask 326912
    %v627 = vsel %vm626, %v625, %v620
    %v628 = vadd.s32 %v595, 4294967256
    %v629 = vlaneseq
    %v630 = vshrl.u32 %v629, 7
    %v631 = vsub.s32 %v628, %v630
    %v632 = vrot.slane %v563, %v631
    %vm633 = vcmask 392512
    %v634 = vsel %vm633, %v632, %v627
    %v635 = vadd.s32 %v595, 4294967248
    %v636 = vlaneseq
    %v637 = vshrl.u32 %v636, 7
    %v638 = vsub.s32 %v635, %v637
    %v639 = vrot.slane %v566, %v638
    %vm640 = vcmask 458112
    %v641 = vsel %vm640, %v639, %v634
    %v642 = vadd.s32 %v595, 4294967240
    %v643 = vlaneseq
    %v644 = vshrl.u32 %v643, 7
    %v645 = vsub.s32 %v642, %v644
    %v646 = vrot.slane %v569, %v645
    %vm647 = vcmask 523712
    %v648 = vsel %vm647, %v646, %v641
    %v649 = vadd.s32 %v595, 4294967232
    %v650 = vlaneseq
    %v651 = vshrl.u32 %v650, 7
    %v652 = vsub.s32 %v649, %v651
    %v653 = vrot.slane %v572, %v652
    %vm654 = vcmask 589312
    %v655 = vsel %vm654, %v653, %v648
    %v656 = vadd.s32 %v595, 4294967224
    %v657 = vlaneseq
    %v658 = vshrl.u32 %v657, 7
    %v659 = vsub.s32 %v656, %v658
    %v660 = vrot.slane %v575, %v659
    %vm661 = vcmask 654912
    %v662 = vsel %vm661, %v660, %v655
    %v663 = vadd.s32 %v595, 4294967216
    %v664 = vlaneseq
    %v665 = vshrl.u32 %v664, 7
    %v666 = vsub.s32 %v663, %v665
    %v667 = vrot.slane %v578, %v666
    %vm668 = vcmask 720512
    %v669 = vsel %vm668, %v667, %v662
    %v670 = vadd.s32 %v595, 4294967208
    %v671 = vlaneseq
    %v672 = vshrl.u32 %v671, 7
    %v673 = vsub.s32 %v670, %v672
    %v674 = vrot.slane %v581, %v673
    %vm675 = vcmask 786112
    %v676 = vsel %vm675, %v674, %v669
    %v677 = vadd.s32 %v595, 4294967200
    %v678 = vlaneseq
    %v679 = vshrl.u32 %v678, 7
    %v680 = vsub.s32 %v677, %v679
    %v681 = vrot.slane %v584, %v680
    %vm682 = vcmask 851712
    %v683 = vsel %vm682, %v681, %v676
    %v684 = vadd.s32 %v595, 4294967192
    %v685 = vlaneseq
    %v686 = vshrl.u32 %v685, 7
    %v687 = vsub.s32 %v684, %v686
    %v688 = vrot.slane %v587, %v687
    %vm689 = vcmask 917312
    %v690 = vsel %vm689, %v688, %v683
    %v691 = vadd.s32 %v595, 4294967184
    %v692 = vlaneseq
    %v693 = vshrl.u32 %v692, 7
    %v694 = vsub.s32 %v691, %v693
    %v695 = vrot.slane %v590, %v694
    %vm696 = vcmask 982912
    %v697 = vsel %vm696, %v695, %v690
    %v698 = vadd.s32 %v595, 4294967176
    %v699 = vlaneseq
    %v700 = vshrl.u32 %v699, 7
    %v701 = vsub.s32 %v698, %v700
    %v702 = vrot.slane %v593, %v701
    %vm703 = vcmask 1048512
    %v704 = vsel %vm703, %v702, %v697
    %706 = vst [vmem:[#allocation3] sm:$0x1] %v704
    // Predicated region
    $region30: #{tpu_custom_call.1} parent=1 // pred_check
      _
    $region31: #{tpu_custom_call.1} parent=1 // pred_check_branch
      %708 = sbr.rel (0) target = $region33
    $region32: #{tpu_custom_call.1} parent=1 // pred_region
      %s710 = ssub.s32 16, 16
      %711 = vsyncadd [#allocation4], %s710
      %s713 = sshll.u32 [#allocation3], 4
      %s714 = int_to_ptr.vmem [resolvable:$true] %s713
      %716 = dma.vmem_to_hbm [thread:$0]  %s714, 16, %s7, [#allocation4]
    $region33: #{tpu_custom_call.1} parent=1 // pred_fallthru
      _
    // Predicated region
    $region34: #{tpu_custom_call.1} parent=1 // pred_check
      _
    $region35: #{tpu_custom_call.1} parent=1 // pred_check_branch
      %718 = sbr.rel (0) target = $region37
    $region36: #{tpu_custom_call.1} parent=1 // pred_region
      %719 = dma.done [#allocation4], 16
    $region37: #{tpu_custom_call.1} parent=1 // pred_fallthru
      _
    %720 = vsyncpa [#allocation4], 1

</llo_original>
